<compile_context>
chip_gen: v5e
topology: v5e:2x2
jax: 0.10.0
libtpu: 0.0.40
codegen_flags: <defaults>
</compile_context>

<pallas_src>
import numpy as np
import jax
import jax.numpy as jnp
from jax.experimental import pallas as pl
from jax.experimental.pallas import tpu as pltpu

_NC = 2          # leading "parallel" grid axis (sharded across v7x TensorCores)
_LANES = 512     # lane-dense row width (multiple of 128)
_SUBLANES = 8    # accumulator sublane span / row-tile granularity


def _cdiv(a, b):
    return -(-a // b)


def _round_up(a, m):
    return _cdiv(a, m) * m


def _vmem_params():
    """Generation-aware (working-set budget, scoped VMEM limit) in bytes."""
    cap = 64 * 1024 * 1024  # conservative default (v7x per-TC VMEM)
    try:
        info = pltpu.get_tpu_info()
        cap = int(getattr(info, "vmem_capacity_bytes", cap) or cap)
    except Exception:
        pass
    # Leave headroom for compiler-internal scratch: limit <= cap - 16 MiB and
    # <= 80% of cap (v7x: ~48 MiB; 128 MiB parts: ~102 MiB).
    limit = min(cap - (16 << 20), int(cap * 0.8))
    limit = max(limit, 32 << 20)
    budget = int(limit * 0.8)
    return budget, limit


def _mse_sq_sum_kernel(x_ref, y_ref, out_ref, acc_ref):
    # x_ref / y_ref : (TR, LANES) input tiles
    # out_ref       : (1, 1, 1) per-core partial sum of squared errors
    # acc_ref       : (8, LANES) f32 accumulator, persistent across inner axis
    r = pl.program_id(1)

    @pl.when(r == 0)
    def _():
        acc_ref[...] = jnp.zeros_like(acc_ref)

    # Cast inside the kernel (bf16 callers don't pay an f32 HBM round trip).
    d = x_ref[...].astype(jnp.float32) - y_ref[...].astype(jnp.float32)
    d2 = d * d
    tr, lanes = d2.shape
    # Fold rows in groups of 8 (one sublane span): summing over the group axis
    # is pure VPU vreg adds, no cross-lane / XLU work per step.
    acc_ref[...] += jnp.sum(d2.reshape(tr // _SUBLANES, _SUBLANES, lanes), axis=0)

    @pl.when(r == pl.num_programs(1) - 1)
    def _():
        # Single tiny tail reduction of the (8, LANES) accumulator.
        out_ref[...] = jnp.sum(acc_ref[...]).reshape(1, 1, 1)


def _mse_sq_sum(x, y):
    """Returns the per-core partial sums (shape (_NC, 1, 1), f32) of (x - y)^2."""
    n = int(np.prod(x.shape))
    itemsize = max(x.dtype.itemsize, y.dtype.itemsize)
    budget, limit = _vmem_params()

    # Row tile from the VMEM budget: 2 inputs x 2 pipeline buffers per row,
    # plus the small fixed (8, LANES) f32 accumulator.
    acc_bytes = _SUBLANES * _LANES * 4
    per_row = _LANES * 2 * 2 * itemsize
    tr_budget = max(
        _SUBLANES,
        ((budget - acc_bytes) // per_row) // _SUBLANES * _SUBLANES,
    )

    rows = _cdiv(n, _LANES)
    tr_needed = _round_up(_cdiv(rows, _NC), _SUBLANES)
    tr = min(tr_budget, tr_needed)
    g = _cdiv(rows, _NC * tr)          # inner grid steps per core
    r_pad = _NC * g * tr               # padded row count

    xf = x.reshape(-1)
    yf = y.reshape(-1)
    pad = r_pad * _LANES - n
    if pad:
        # Zero padding in BOTH inputs contributes exactly 0 to the sum.
        xf = jnp.pad(xf, (0, pad))
        yf = jnp.pad(yf, (0, pad))
    x2 = xf.reshape(r_pad, _LANES)
    y2 = yf.reshape(r_pad, _LANES)

    cost = pl.CostEstimate(
        flops=3 * n,
        transcendentals=0,
        bytes_accessed=n * (x.dtype.itemsize + y.dtype.itemsize) + _NC * 4,
    )

    return pl.pallas_call(
        _mse_sq_sum_kernel,
        out_shape=jax.ShapeDtypeStruct((_NC, 1, 1), jnp.float32),
        grid_spec=pltpu.PrefetchScalarGridSpec(
            num_scalar_prefetch=0,
            grid=(_NC, g),
            in_specs=[
                pl.BlockSpec((tr, _LANES), lambda c, r: (c * g + r, 0)),
                pl.BlockSpec((tr, _LANES), lambda c, r: (c * g + r, 0)),
            ],
            out_specs=pl.BlockSpec((1, 1, 1), lambda c, r: (c, 0, 0)),
            scratch_shapes=[pltpu.VMEM((_SUBLANES, _LANES), jnp.float32)],
        ),
        compiler_params=pltpu.CompilerParams(
            dimension_semantics=("parallel", "arbitrary"),
            vmem_limit_bytes=limit,
        ),
        cost_estimate=cost,
    )(x2, y2)


def magnitude_loss(x, y, weight=1.0):
    """JAX/Pallas equivalent of MagnitudeLoss.forward(x, y).

    x, y: dicts with key 'magnitude' holding same-shape arrays (f32 or bf16).
    """
    xm = x["magnitude"]
    ym = y["magnitude"]
    assert xm.shape == ym.shape, "magnitude shapes must match"
    n_elems = int(np.prod(xm.shape))
    partials = _mse_sq_sum(xm, ym)          # (_NC, 1, 1) per-core partial sums
    total = jnp.sum(partials)
    return (total / n_elems) * weight


def _magnitude_loss_ref(x, y, weight=1.0):
    # Pure-JAX reference for correctness checking.
    xm = x["magnitude"].astype(jnp.float32)
    ym = y["magnitude"].astype(jnp.float32)
    return jnp.mean((xm - ym) ** 2) * weight


if __name__ == "__main__":
    key = jax.random.PRNGKey(0)
    k1, k2 = jax.random.split(key)
    B, F, T = 2, 16, 128
    mag_r = jax.random.uniform(k1, (B, F, T), jnp.float32, 0.0, 4.0)
    mag_g = jax.random.uniform(k2, (B, F, T), jnp.float32, 0.0, 4.0)

    x = {"magnitude": mag_r}
    y = {"magnitude": mag_g}

    out = magnitude_loss(x, y, weight=1.0)
    out = jax.block_until_ready(out)

    ref = jax.block_until_ready(_magnitude_loss_ref(x, y, weight=1.0))
    assert np.allclose(np.asarray(out), np.asarray(ref), rtol=1e-5, atol=1e-5), (
        out, ref)

    print("KERNEL_OK")
</pallas_src>

<mosaic_0001>
module attributes {stable_mosaic.version = 11 : i64} {
  func.func @_mse_sq_sum_kernel(%arg0: i32, %arg1: i32, %arg2: memref<8x512xf32, #tpu.memory_space<vmem>>, %arg3: memref<8x512xf32, #tpu.memory_space<vmem>>, %arg4: memref<1x1x1xf32, #tpu.memory_space<vmem>>, %arg5: memref<8x512xf32, #tpu.memory_space<vmem>>) attributes {dimension_semantics = [#tpu.dimension_semantics<parallel>, #tpu.dimension_semantics<arbitrary>], iteration_bounds = array<i64: 2, 1>, scalar_prefetch = 0 : i64, scratch_operands = 1 : i64, tpu.core_type = #tpu.core_type<tc>, window_params = [{transform_indices = @transform_0, window_bounds = array<i64: 8, 512>}, {transform_indices = @transform_1, window_bounds = array<i64: 8, 512>}, {transform_indices = @transform_2, window_bounds = array<i64: 1, 1, 1>}]} {
    %c0_i32 = arith.constant 0 : i32
    %0 = arith.cmpi eq, %arg1, %c0_i32 : i32
    %1 = arith.extui %0 : i1 to i32
    %c0_i32_0 = arith.constant 0 : i32
    %2 = arith.cmpi ne, %1, %c0_i32_0 : i32
    scf.if %2 {
      %cst_10 = arith.constant 0.000000e+00 : f32
      %15 = vector.broadcast %cst_10 : f32 to vector<8x512xf32>
      %c0_11 = arith.constant 0 : index
      %c0_12 = arith.constant 0 : index
      %16 = vector.load %arg5[%c0_11, %c0_12] : memref<8x512xf32, #tpu.memory_space<vmem>>, vector<8x512xf32>
      tpu.vector_store %arg5[%c0_11, %c0_12], %15 {strides = array<i32>} : memref<8x512xf32, #tpu.memory_space<vmem>>, vector<8x512xf32>,
    } else {
    }
    %c0 = arith.constant 0 : index
    %c0_1 = arith.constant 0 : index
    %3 = vector.load %arg2[%c0, %c0_1] : memref<8x512xf32, #tpu.memory_space<vmem>>, vector<8x512xf32>
    %c0_2 = arith.constant 0 : index
    %c0_3 = arith.constant 0 : index
    %4 = vector.load %arg3[%c0_2, %c0_3] : memref<8x512xf32, #tpu.memory_space<vmem>>, vector<8x512xf32>
    %5 = arith.subf %3, %4 : vector<8x512xf32>
    %6 = arith.mulf %5, %5 : vector<8x512xf32>
    %c0_4 = arith.constant 0 : index
    %c0_5 = arith.constant 0 : index
    %7 = vector.load %arg5[%c0_4, %c0_5] : memref<8x512xf32, #tpu.memory_space<vmem>>, vector<8x512xf32>
    %8 = vector.shape_cast %6 : vector<8x512xf32> to vector<1x8x512xf32>
    %cst = arith.constant dense<0.000000e+00> : vector<8x512xf32>
    %9 = vector.multi_reduction <add>, %8, %cst [0] : vector<1x8x512xf32> to vector<8x512xf32>
    %10 = arith.addf %7, %9 : vector<8x512xf32>
    %c0_6 = arith.constant 0 : index
    %c0_7 = arith.constant 0 : index
    %11 = vector.load %arg5[%c0_6, %c0_7] : memref<8x512xf32, #tpu.memory_space<vmem>>, vector<8x512xf32>
    tpu.vector_store %arg5[%c0_6, %c0_7], %10 {strides = array<i32>} : memref<8x512xf32, #tpu.memory_space<vmem>>, vector<8x512xf32>,
    %c0_i32_8 = arith.constant 0 : i32
    %12 = arith.cmpi eq, %arg1, %c0_i32_8 : i32
    %13 = arith.extui %12 : i1 to i32
    %c0_i32_9 = arith.constant 0 : i32
    %14 = arith.cmpi ne, %13, %c0_i32_9 : i32
    scf.if %14 {
      %c0_10 = arith.constant 0 : index
      %c0_11 = arith.constant 0 : index
      %15 = vector.load %arg5[%c0_10, %c0_11] : memref<8x512xf32, #tpu.memory_space<vmem>>, vector<8x512xf32>
      %16 = vector.shape_cast %15 : vector<8x512xf32> to vector<1x8x512xf32>
      %cst_12 = arith.constant dense<0.000000e+00> : vector<1xf32>
      %17 = vector.multi_reduction <add>, %16, %cst_12 [1, 2] : vector<1x8x512xf32> to vector<1xf32>
      %18 = vector.shape_cast %17 : vector<1xf32> to vector<1x1x1xf32>
      %19 = vector.extract %18[0, 0, 0] : f32 from vector<1x1x1xf32>
      %20 = vector.broadcast %19 : f32 to vector<1x1x1xf32>
      %c0_13 = arith.constant 0 : index
      %c0_14 = arith.constant 0 : index
      %c0_15 = arith.constant 0 : index
      %21 = vector.load %arg4[%c0_13, %c0_14, %c0_15] : memref<1x1x1xf32, #tpu.memory_space<vmem>>, vector<1x1x1xf32>
      tpu.vector_store %arg4[%c0_13, %c0_14, %c0_15], %20 {strides = array<i32>} : memref<1x1x1xf32, #tpu.memory_space<vmem>>, vector<1x1x1xf32>,
    } else {
    }
    return
  }
  func.func @transform_0(%arg0: i32, %arg1: i32) -> (i32, i32) {
    %c1_i32 = arith.constant 1 : i32
    %0 = arith.muli %arg0, %c1_i32 : i32
    %1 = arith.addi %0, %arg1 : i32
    %c0_i32 = arith.constant 0 : i32
    %c0_i32_0 = arith.constant 0 : i32
    return %1, %c0_i32 : i32, i32
  }
  func.func @transform_1(%arg0: i32, %arg1: i32) -> (i32, i32) {
    %c1_i32 = arith.constant 1 : i32
    %0 = arith.muli %arg0, %c1_i32 : i32
    %1 = arith.addi %0, %arg1 : i32
    %c0_i32 = arith.constant 0 : i32
    %c0_i32_0 = arith.constant 0 : i32
    return %1, %c0_i32 : i32, i32
  }
  func.func @transform_2(%arg0: i32, %arg1: i32) -> (i32, i32, i32) {
    %c0_i32 = arith.constant 0 : i32
    %c0_i32_0 = arith.constant 0 : i32
    %c0_i32_1 = arith.constant 0 : i32
    return %arg0, %c0_i32, %c0_i32_0 : i32, i32, i32
  }
}

</mosaic_0001>

<llo_original>
// kernel: tpu_custom_call.1
$region0: #{tpu_custom_call.1}
  #allocation0 [shape = 'u32[]', space=smem, size = 0x4, offset = 0x4, fixed_abs, tag = 'smem constant byte address 0x4 - core index']
  #allocation1 [shape = 'u32[72,128]{1,0:T(1,128)}', space=vmem, size = 0x9000, scoped, tag = 'internal scratch']
  #allocation2 [shape = 'f32[8,512]{1,0:T(8,128)}', space=vmem, size = 0x4000, scoped, tag = 'scratch operand']
  %s0 = inlined_call_operand.hbm [shape: f32[16,512], index: 0, kind: input, shape index: {}]
  %s1 = inlined_call_operand.hbm [shape: f32[16,512], index: 1, kind: input, shape index: {}]
  %s2 = inlined_call_operand.vmem [shape: f32[2,1,1], index: 2, kind: output, shape index: {}]
  %s3 = sld [smem:[#allocation0]]
  $region57: #{tpu_custom_call.1} parent=0
    _
  %s5 = ssub.s32 1, %s3
  %s6 = scalar_select 0, %s5, %s3
  $region1: #{tpu_custom_call.1} parent=0
    #allocation3 [shape = 'u8[32768]{0}', space=vmem, size = 0x8000, scoped, tag = 'input window, operand 0']
    #allocation4 [shape = 's32[2]{0}', space=sflag, size = 0x8, scoped, tag = 'scoped memory for tpu_custom_call.1']
    #allocation5 [shape = 'u8[32768]{0}', space=vmem, size = 0x8000, scoped, tag = 'input window, operand 1']
    #allocation6 [shape = 's32[2]{0}', space=sflag, size = 0x8, scoped, tag = 'scoped memory for tpu_custom_call.1']
    %7 = vsyncpa [#allocation4], 0
    %s8 = scalar_lea.sflag [#allocation4], 1
    %9 = vsyncpa %s8, 0
    %10 = vsyncpa [#allocation6], 0
    %s11 = scalar_lea.sflag [#allocation6], 1
    %12 = vsyncpa %s11, 0
    loop: start=0, step=1, limit=4
    $region2: #{tpu_custom_call.1} parent=1 // loop_pre_header
      _
    $region3: #{tpu_custom_call.1} parent=1 // loop_header
      %s14 = sphi 0, %s18
      %p15 = scmp.ge.s32.totalorder %s14, 4
      %s21 = sphi 0, %s33
      %s22 = sphi 0, %s29
      %s23 = sphi 0, %s21
      %s24 = sphi 0, %s22
      %s25 = sphi 0, %s23
      %s26 = sphi 0, %s24
      %s38 = sphi 0, %s40
      %s41 = sphi 0, %s38
      %s42 = sphi 0, %s41
      %s58 = sphi 0, %s42
      %s66 = sphi 0, %s68
      %s69 = sphi 0, %s66
      %s70 = sphi 0, %s69
      %s86 = sphi 0, %s70
      %s92 = sphi 0, %s94
      %s95 = sphi 0, %s92
      %s96 = sphi 0, %s95
      %s112 = sphi 0, %s96
    $region4: #{tpu_custom_call.1} parent=1 // loop_header_branch
      %17 = sbr.rel (%p15) target = $region8
    $region5: #{tpu_custom_call.1} parent=1 // loop_body
      %s19 = ssub.s32 %s14, 1
      %s20 = ssub.s32 %s14, 2
      %s27 = sadd.s32 1, %s22
      %p28 = scmp.ge.s32.totalorder %s27, 1
      %s29 = scalar_select %p28, 0, %s27
      %s30 = sadd.s32 1, %s21
      %s31 = scalar_select %p28, %s30, %s21
      %p32 = scmp.ge.s32.totalorder %s31, 2
      %s33 = scalar_select %p32, 0, %s31
      %s34 = sadd.s32 %s21, %s22
      %s35 = sadd.s32 %s33, %s29
      %s36 = ssub.s32 %s34, %s35
      %p37 = scmp.eq.s32.totalorder %s36, 0
      %s39 = sadd.s32 %s38, 1
      %s40 = scalar_select %p37, %s38, %s39
      %p43 = pneg %p37
      %p44 = scmp.eq.s32.totalorder %s14, 1
      %p45 = por %p43, %p44
      %p46 = scmp.ne.s32.totalorder %s38, %s41
      %p47 = scmp.eq.s32.totalorder %s14, 0
      %p48 = por %p46, %p47
      %p49 = scmp.ne.s32.totalorder %s38, %s41
      %p50 = scmp.eq.s32.totalorder %s19, 1
      %p51 = por %p49, %p50
      %p52 = scmp.ne.s32.totalorder %s41, %s42
      %p53 = scmp.eq.s32.totalorder %s19, 0
      %p54 = por %p52, %p53
      %p55 = scmp.ne.s32.totalorder %s41, %s42
      %p56 = scmp.eq.s32.totalorder %s20, 1
      %p57 = por %p55, %p56
      %p59 = scmp.ne.s32.totalorder %s42, %s58
      %p60 = scmp.eq.s32.totalorder %s20, 0
      %p61 = por %p59, %p60
      %s62 = sadd.s32 %s21, %s22
      %s63 = sadd.s32 %s33, %s29
      %s64 = ssub.s32 %s62, %s63
      %p65 = scmp.eq.s32.totalorder %s64, 0
      %s67 = sadd.s32 %s66, 1
      %s68 = scalar_select %p65, %s66, %s67
      %p71 = pneg %p65
      %p72 = scmp.eq.s32.totalorder %s14, 1
      %p73 = por %p71, %p72
      %p74 = scmp.ne.s32.totalorder %s66, %s69
      %p75 = scmp.eq.s32.totalorder %s14, 0
      %p76 = por %p74, %p75
      %p77 = scmp.ne.s32.totalorder %s66, %s69
      %p78 = scmp.eq.s32.totalorder %s19, 1
      %p79 = por %p77, %p78
      %p80 = scmp.ne.s32.totalorder %s69, %s70
      %p81 = scmp.eq.s32.totalorder %s19, 0
      %p82 = por %p80, %p81
      %p83 = scmp.ne.s32.totalorder %s69, %s70
      %p84 = scmp.eq.s32.totalorder %s20, 1
      %p85 = por %p83, %p84
      %p87 = scmp.ne.s32.totalorder %s70, %s86
      %p88 = scmp.eq.s32.totalorder %s20, 0
      %p89 = por %p87, %p88
      %s90 = ssub.s32 %s21, %s33
      %p91 = scmp.eq.s32.totalorder %s90, 0
      %s93 = sadd.s32 %s92, 1
      %s94 = scalar_select %p91, %s92, %s93
      %p97 = pneg %p91
      %p98 = scmp.eq.s32.totalorder %s14, 1
      %p99 = por %p97, %p98
      %p100 = scmp.ne.s32.totalorder %s92, %s95
      %p101 = scmp.eq.s32.totalorder %s14, 0
      %p102 = por %p100, %p101
      %p103 = scmp.ne.s32.totalorder %s92, %s95
      %p104 = scmp.eq.s32.totalorder %s19, 1
      %p105 = por %p103, %p104
      %p106 = scmp.ne.s32.totalorder %s95, %s96
      %p107 = scmp.eq.s32.totalorder %s19, 0
      %p108 = por %p106, %p107
      %p109 = scmp.ne.s32.totalorder %s95, %s96
      %p110 = scmp.eq.s32.totalorder %s20, 1
      %p111 = por %p109, %p110
      %p113 = scmp.ne.s32.totalorder %s96, %s112
      %p114 = scmp.eq.s32.totalorder %s20, 0
      %p115 = por %p113, %p114
      %p116 = scmp.le.s32.totalorder 1, %s14
      %p117 = scmp.lt.s32.totalorder %s14, 3
      %p118 = pnand %p116, %p117
      %p119 = pneg %p118
      // Predicated region
      $region9: #{tpu_custom_call.1} parent=5 // pred_check
        _
      $region10: #{tpu_custom_call.1} parent=5 // pred_check_branch
        %121 = sbr.rel (%p118) target = $region12
      $region11: #{tpu_custom_call.1} parent=5 // pred_region
        %s122 = ssub.s32 %s14, 1
      $region12: #{tpu_custom_call.1} parent=5 // pred_fallthru
        _
      %p123 = scmp.lt.s32.totalorder %s14, 2
      // Predicated region
      $region13: #{tpu_custom_call.1} parent=5 // pred_check
        %p124 = pneg %p123
      $region14: #{tpu_custom_call.1} parent=5 // pred_check_branch
        %126 = sbr.rel (%p124) target = $region16
      $region15: #{tpu_custom_call.1} parent=5 // pred_region
        // Predicated region
        $region17: #{tpu_custom_call.1} parent=15 // pred_check
          %p127 = pneg %p48
        $region18: #{tpu_custom_call.1} parent=15 // pred_check_branch
          %129 = sbr.rel (%p127) target = $region20
        $region19: #{tpu_custom_call.1} parent=15 // pred_region
          %s130 = sand.u32 %s38, 1
          %s131 = scalar_lea.sflag [#allocation4], %s130
          %s132 = sand.u32 %s38, 1
          %s133 = smul.addr %s132, 32
          %s134 = scalar_lea.vmem [#allocation3], %s133
          %s135 = sadd.s32 %s21, %s22
          %137 = vsyncadd %s131, 0
          %s138 = smul.addr %s135, 4
          %s139 = smul.addr %s138, 8
          %s140 = scalar_lea.hbm %s0, %s139
          %s142 = sshll.u32 %s140, 4
          %s143 = int_to_ptr.hbm [resolvable:$true] %s142
          %s144 = sshll.u32 %s134, 4
          %s145 = int_to_ptr.vmem [resolvable:$true] %s144
          %147 = dma.hbm_to_vmem [thread:$0]  %s143, 512, %s145, %s131
        $region20: #{tpu_custom_call.1} parent=15 // pred_fallthru
          _
        // Predicated region
        $region21: #{tpu_custom_call.1} parent=15 // pred_check
          %p148 = pneg %p76
        $region22: #{tpu_custom_call.1} parent=15 // pred_check_branch
          %150 = sbr.rel (%p148) target = $region24
        $region23: #{tpu_custom_call.1} parent=15 // pred_region
          %s151 = sand.u32 %s66, 1
          %s152 = scalar_lea.sflag [#allocation6], %s151
          %s153 = sand.u32 %s66, 1
          %s154 = smul.addr %s153, 32
          %s155 = scalar_lea.vmem [#allocation5], %s154
          %s156 = sadd.s32 %s21, %s22
          %158 = vsyncadd %s152, 0
          %s159 = smul.addr %s156, 4
          %s160 = smul.addr %s159, 8
          %s161 = scalar_lea.hbm %s1, %s160
          %s163 = sshll.u32 %s161, 4
          %s164 = int_to_ptr.hbm [resolvable:$true] %s163
          %s165 = sshll.u32 %s155, 4
          %s166 = int_to_ptr.vmem [resolvable:$true] %s165
          %168 = dma.hbm_to_vmem [thread:$0]  %s164, 512, %s166, %s152
        $region24: #{tpu_custom_call.1} parent=15 // pred_fallthru
          _
      $region16: #{tpu_custom_call.1} parent=5 // pred_fallthru
        _
      %p169 = scmp.le.s32.totalorder 1, %s14
      %p170 = scmp.lt.s32.totalorder %s14, 3
      %p171 = pnand %p169, %p170
      %p172 = pneg %p171
      // Predicated region
      $region25: #{tpu_custom_call.1} parent=5 // pred_check
        _
      $region26: #{tpu_custom_call.1} parent=5 // pred_check_branch
        %174 = sbr.rel (%p171) target = $region28
      $region27: #{tpu_custom_call.1} parent=5 // pred_region
        %s175 = ssub.s32 %s14, 1
        %s176 = sand.u32 %s41, 1
        %s177 = scalar_lea.sflag [#allocation4], %s176
        %s178 = sand.u32 %s41, 1
        %s179 = smul.addr %s178, 32
        %s180 = scalar_lea.vmem [#allocation3], %s179
        // Predicated region
        $region29: #{tpu_custom_call.1} parent=27 // pred_check
          %p181 = pneg %p54
        $region30: #{tpu_custom_call.1} parent=27 // pred_check_branch
          %183 = sbr.rel (%p181) target = $region32
        $region31: #{tpu_custom_call.1} parent=27 // pred_region
          %185 = dma.done %s177, 512
        $region32: #{tpu_custom_call.1} parent=27 // pred_fallthru
          _
        %s186 = sand.u32 %s69, 1
        %s187 = scalar_lea.sflag [#allocation6], %s186
        %s188 = sand.u32 %s69, 1
        %s189 = smul.addr %s188, 32
        %s190 = scalar_lea.vmem [#allocation5], %s189
        // Predicated region
        $region33: #{tpu_custom_call.1} parent=27 // pred_check
          %p191 = pneg %p82
        $region34: #{tpu_custom_call.1} parent=27 // pred_check_branch
          %193 = sbr.rel (%p191) target = $region36
        $region35: #{tpu_custom_call.1} parent=27 // pred_region
          %195 = dma.done %s187, 512
        $region36: #{tpu_custom_call.1} parent=27 // pred_fallthru
          _
        %s196 = sand.u32 %s41, 1
        %s197 = scalar_lea.sflag [#allocation4], %s196
        %s198 = sand.u32 %s41, 1
        %s199 = smul.addr %s198, 32
        %s200 = scalar_lea.vmem [#allocation3], %s199
        %p201 = pneg %p54
        %p202 = pneg %p51
        %s203 = sand.u32 %s69, 1
        %s204 = scalar_lea.sflag [#allocation6], %s203
        %s205 = sand.u32 %s69, 1
        %s206 = smul.addr %s205, 32
        %s207 = scalar_lea.vmem [#allocation5], %s206
        %p208 = pneg %p82
        %p209 = pneg %p79
        %p210 = pneg %p108
        %p211 = pneg %p105
        %p212 = scmp.lt.s32.totalorder %s23, 1
        %s213 = scalar_select %p212, %s23, 1
        %s214 = scalar_lea.vmem %s2, %s213
        %s215 = sadd.s32 %s23, %s24
        %s216 = sadd.s32 %s23, %s24
        %p217 = scmp.lt.s32.totalorder %s23, 1
        %s218 = scalar_select %p217, %s23, 1
        %s219 = scalar_lea.vmem %s2, %s218
        %p220 = scmp.eq.s32.totalorder %s24, 0
        // Predicated region
        $region37: #{tpu_custom_call.1} parent=27 // pred_check
          %p221 = pneg %p220
        $region38: #{tpu_custom_call.1} parent=27 // pred_check_branch
          %223 = sbr.rel (%p221) target = $region40
        $region39: #{tpu_custom_call.1} parent=27 // pred_region
          %224 = vst [vmem:[#allocation2] sm:$0xff] 0.0
          %225 = vst [vmem:[#allocation2 + $0x8] sm:$0xff] 0.0
          %226 = vst [vmem:[#allocation2 + $0x10] sm:$0xff] 0.0
          %227 = vst [vmem:[#allocation2 + $0x18] sm:$0xff] 0.0
        $region40: #{tpu_custom_call.1} parent=27 // pred_fallthru
          _
        %v228 = vld [vmem:[%s180] sm:$0xff]
        %v229 = vld [vmem:[%s180 + $0x8] sm:$0xff]
        %v230 = vld [vmem:[%s180 + $0x10] sm:$0xff]
        %v231 = vld [vmem:[%s180 + $0x18] sm:$0xff]
        %v232 = vld [vmem:[%s190] sm:$0xff]
        %v233 = vld [vmem:[%s190 + $0x8] sm:$0xff]
        %v234 = vld [vmem:[%s190 + $0x10] sm:$0xff]
        %v235 = vld [vmem:[%s190 + $0x18] sm:$0xff]
        %v236 = vsub.f32 %v228, %v232
        %v237 = vsub.f32 %v229, %v233
        %v238 = vsub.f32 %v230, %v234
        %v239 = vsub.f32 %v231, %v235
        %v240 = vmul.f32 %v236, %v236
        %v241 = vmul.f32 %v237, %v237
        %v242 = vmul.f32 %v238, %v238
        %v243 = vmul.f32 %v239, %v239
        %v244 = vld [vmem:[#allocation2] sm:$0xff]
        %v245 = vld [vmem:[#allocation2 + $0x8] sm:$0xff]
        %v246 = vld [vmem:[#allocation2 + $0x10] sm:$0xff]
        %v247 = vld [vmem:[#allocation2 + $0x18] sm:$0xff]
        %v248 = vadd.f32 %v240, 0.0
        %v249 = vadd.f32 %v241, 0.0
        %v250 = vadd.f32 %v242, 0.0
        %v251 = vadd.f32 %v243, 0.0
        %v252 = vadd.f32 %v244, %v248
        %v253 = vadd.f32 %v245, %v249
        %v254 = vadd.f32 %v246, %v250
        %v255 = vadd.f32 %v247, %v251
        %256 = vst [vmem:[#allocation2] sm:$0xff] %v252
        %257 = vst [vmem:[#allocation2 + $0x8] sm:$0xff] %v253
        %258 = vst [vmem:[#allocation2 + $0x10] sm:$0xff] %v254
        %259 = vst [vmem:[#allocation2 + $0x18] sm:$0xff] %v255
        // Predicated region
        $region41: #{tpu_custom_call.1} parent=27 // pred_check
          %p260 = pneg %p220
        $region42: #{tpu_custom_call.1} parent=27 // pred_check_branch
          %262 = sbr.rel (%p260) target = $region44
        $region43: #{tpu_custom_call.1} parent=27 // pred_region
          %v263 = vld [vmem:[#allocation2] sm:$0xff]
          %v264 = vld [vmem:[#allocation2 + $0x8] sm:$0xff]
          %v265 = vld [vmem:[#allocation2 + $0x10] sm:$0xff]
          %v266 = vld [vmem:[#allocation2 + $0x18] sm:$0xff]
          %v267 = vadd.f32 %v263, %v264
          %v268 = vadd.f32 %v267, %v265
          %v269 = vadd.f32 %v268, %v266
          %270 = vadd.xlane.f32.xlu0 %v269
          %v271 = vpop.xlane.xlu0 %270
          %v272 = vrot.slane %v271, 4
          %v273 = vadd.f32 %v271, %v272
          %v274 = vrot.slane %v273, 2
          %v275 = vadd.f32 %v273, %v274
          %v276 = vrot.slane %v275, 1
          %v277 = vadd.f32 %v275, %v276
          %s278 = vtos %v277
          %v279 = vstv %s278
          %vm280 = vcmask 0
          %281 = vst.msk [vmem:[%s219] sm:$0x1] %vm280, %v279
        $region44: #{tpu_custom_call.1} parent=27 // pred_fallthru
          _
        %p282 = scmp.lt.s32.totalorder %s23, 1
        %s283 = scalar_select %p282, %s23, 1
        %s284 = scalar_lea.vmem %s2, %s283
        // Predicated region
        $region45: #{tpu_custom_call.1} parent=27 // pred_check
          %p285 = pneg %p105
        $region46: #{tpu_custom_call.1} parent=27 // pred_check_branch
          %287 = sbr.rel (%p285) target = $region48
        $region47: #{tpu_custom_call.1} parent=27 // pred_region
          _
        $region48: #{tpu_custom_call.1} parent=27 // pred_fallthru
          _
      $region28: #{tpu_custom_call.1} parent=5 // pred_fallthru
        _
      %p288 = scmp.le.s32.totalorder 2, %s14
      // Predicated region
      $region49: #{tpu_custom_call.1} parent=5 // pred_check
        %p289 = pneg %p288
      $region50: #{tpu_custom_call.1} parent=5 // pred_check_branch
        %291 = sbr.rel (%p289) target = $region52
      $region51: #{tpu_custom_call.1} parent=5 // pred_region
        %s292 = ssub.s32 %s14, 2
        // Predicated region
        $region53: #{tpu_custom_call.1} parent=51 // pred_check
          %p293 = pneg %p111
        $region54: #{tpu_custom_call.1} parent=51 // pred_check_branch
          %295 = sbr.rel (%p293) target = $region56
        $region55: #{tpu_custom_call.1} parent=51 // pred_region
          %p296 = scmp.lt.s32.totalorder %s25, 1
          %s297 = scalar_select %p296, %s25, 1
          %s298 = scalar_lea.vmem %s2, %s297
        $region56: #{tpu_custom_call.1} parent=51 // pred_fallthru
          _
      $region52: #{tpu_custom_call.1} parent=5 // pred_fallthru
        _
    $region6: #{tpu_custom_call.1} parent=1 // loop_footer
      %s18 = sadd.s32 1, %s14
    $region7: #{tpu_custom_call.1} parent=1 // loop_footer_branch
      %13 = sbr.rel target = $region3
    $region8: #{tpu_custom_call.1} parent=1 // loop_exit
      _
    %299 = vsyncpa [#allocation4], 1
    %s300 = scalar_lea.sflag [#allocation4], 1
    %301 = vsyncpa %s300, 1
    %302 = vsyncpa [#allocation6], 1
    %s303 = scalar_lea.sflag [#allocation6], 1
    %304 = vsyncpa %s303, 1

</llo_original>
